<compile_context>
chip_gen: v6e
topology: v6e:2x2x1
jax: 0.10.0
libtpu: 0.0.40
codegen_flags: <defaults>
</compile_context>

<pallas_src>
import functools

import jax
import jax.numpy as jnp
from jax.experimental import pallas as pl
from jax.experimental.pallas import tpu as pltpu


_TARGET_RESIDENT_BYTES = 20 << 20     # double-buffered (in+out) blocks per grid step
_MATMUL_LANE_BLOCK_CAP = 256          # lanes; keeps the MXU fallback HBM-bound
_STRIDED_LANE_BLOCK_CAP = 64 * 1024   # lanes; pure-copy path only blocks huge H*W
_VMEM_LIMIT_FLOOR = 32 << 20
_VMEM_LIMIT_CEIL = 56 << 20           # stay under v7x's 64 MiB/TC physical VMEM


# --------------------------------------------------------------------------
# Kernels
# --------------------------------------------------------------------------
def _strided_copy_kernel(x_ref, o_ref):
    # Lane-strided in-register deinterleave of the resident tile: read lanes
    # 0,2,4,... and store them densely.  Pure-bandwidth path; its Mosaic
    # support is verified by a runtime probe before it is selected.
    o_ref[...] = x_ref[:, pl.ds(0, o_ref.shape[-1], stride=2)]


def _make_select_matmul_kernel(w):
    """Deinterleave via a 0/1 selection matmul on the MXU.

    Exact for floating-point inputs: the f32 operand is split into three
    non-overlapping bf16 terms (Dekker-style), each multiplied by the 0/1
    selector in the MXU's native bf16 mode and accumulated in f32, so the
    selected value is reconstructed bit-exactly.  Discarded (odd) lanes are
    zeroed with jnp.where first so NaN/Inf there cannot leak into outputs.
    """
    # TODO(synk): integer inputs wider than 24 bits lose precision on this
    # MXU fallback path (the strided path, when available, is exact for them).
    def kernel(x_ref, sel_ref, o_ref):
        x = x_ref[...]
        lane = jax.lax.broadcasted_iota(jnp.int32, x.shape, 1)
        keep = (lane % w) % 2 == 0
        xf = jnp.where(keep, x, jnp.zeros_like(x)).astype(jnp.float32)

        sel = sel_ref[...]                               # (lb_in, lb_out) 0/1 bf16
        hi = xf.astype(jnp.bfloat16)
        r1 = xf - hi.astype(jnp.float32)
        mid = r1.astype(jnp.bfloat16)
        lo = (r1 - mid.astype(jnp.float32)).astype(jnp.bfloat16)

        acc = jnp.dot(hi, sel, preferred_element_type=jnp.float32)
        acc = acc + jnp.dot(mid, sel, preferred_element_type=jnp.float32)
        acc = acc + jnp.dot(lo, sel, preferred_element_type=jnp.float32)
        o_ref[...] = acc.astype(o_ref.dtype)

    return kernel


# --------------------------------------------------------------------------
# Tiling helpers
# --------------------------------------------------------------------------
def _sublane_pack(itemsize):
    # 8 rows for 4-byte, 16 for 2-byte, 32 for 1-byte dtypes.
    return max(8, 8 * (4 // max(1, itemsize)))


def _choose_h_block(h, w, w_out, cap_lanes):
    """Number of H rows per lane block (lane block = hb*W input lanes)."""
    if h * w <= cap_lanes:
        return h                                   # single lane block (full dims)
    for hb in range(h, 0, -1):
        if h % hb:
            continue
        if hb * w > cap_lanes:
            continue
        # Multi-block lane axis must keep blocks 128-lane aligned.
        if (hb * w) % 128 == 0 and (hb * w_out) % 128 == 0:
            return hb
    # TODO(synk): very large H*W with no 128-aligned divisor would need a
    # padded lane-blocking scheme; fall back to one (large) lane block.
    return h


def _choose_row_tile(rows, per_row_block_bytes, sublane):
    """Largest sublane-aligned row tile that keeps the double-buffered
    (input+output) working set around _TARGET_RESIDENT_BYTES."""
    if rows <= sublane or 2 * rows * per_row_block_bytes <= _TARGET_RESIDENT_BYTES:
        return rows
    cap = _TARGET_RESIDENT_BYTES // (2 * per_row_block_bytes)
    tile = (min(int(cap), rows) // sublane) * sublane
    return max(tile, sublane)


def _build_selector(w, w_out, hb):
    """0/1 selector S[(h,w_in) -> (h,k)] with 1 iff w_in == 2*k, as bf16."""
    j = jnp.arange(hb * w, dtype=jnp.int32)
    m = jnp.arange(hb * w_out, dtype=jnp.int32)
    same_row = (j[:, None] // w) == (m[None, :] // w_out)
    picks = (j[:, None] % w) == 2 * (m[None, :] % w_out)
    return (same_row & picks).astype(jnp.bfloat16)


# --------------------------------------------------------------------------
# pallas_call driver
# --------------------------------------------------------------------------
def _slice_impl(x, impl):
    n, c, h, w = x.shape
    w_out = (w + 1) // 2
    rows, lanes_in, lanes_out = n * c, h * w, h * w_out
    itemsize = jnp.dtype(x.dtype).itemsize
    sublane = _sublane_pack(itemsize)

    if impl == "strided" and w % 2:
        raise ValueError("strided implementation requires even W")

    cap = _STRIDED_LANE_BLOCK_CAP if impl == "strided" else _MATMUL_LANE_BLOCK_CAP
    hb = _choose_h_block(h, w, w_out, cap)
    lb_in, lb_out = hb * w, hb * w_out
    n_lane_blocks = h // hb

    per_row = (lb_in + lb_out) * itemsize
    tile_rows = _choose_row_tile(rows, per_row, sublane)
    grid = (pl.cdiv(rows, tile_rows), n_lane_blocks)

    x2 = x.reshape(rows, lanes_in)

    in_block_bytes = tile_rows * lb_in * itemsize
    out_block_bytes = tile_rows * lb_out * itemsize
    sel_bytes = (lb_in * lb_out * 2) if impl != "strided" else 0
    vmem_limit = int(min(_VMEM_LIMIT_CEIL,
                         max(_VMEM_LIMIT_FLOOR,
                             3 * (in_block_bytes + out_block_bytes)
                             + 3 * sel_bytes + (2 << 20))))

    flops = 0 if impl == "strided" else 3 * 2 * rows * lb_in * lb_out * n_lane_blocks
    cost = pl.CostEstimate(
        flops=int(flops),
        transcendentals=0,
        bytes_accessed=int(rows * (lanes_in + lanes_out) * itemsize + sel_bytes))

    cparams = pltpu.CompilerParams(
        dimension_semantics=("parallel", "parallel"),
        vmem_limit_bytes=vmem_limit)

    x_spec = pl.BlockSpec((tile_rows, lb_in), lambda i, j: (i, j))
    out_spec = pl.BlockSpec((tile_rows, lb_out), lambda i, j: (i, j))
    out_shape = jax.ShapeDtypeStruct((rows, lanes_out), x.dtype)

    if impl == "strided":
        out2 = pl.pallas_call(
            _strided_copy_kernel,
            out_shape=out_shape,
            grid_spec=pltpu.PrefetchScalarGridSpec(
                num_scalar_prefetch=0, grid=grid,
                in_specs=[x_spec], out_specs=out_spec),
            compiler_params=cparams,
            cost_estimate=cost,
        )(x2)
    else:
        sel = _build_selector(w, w_out, hb)
        sel_spec = pl.BlockSpec((lb_in, lb_out), lambda i, j: (0, 0))  # resident
        out2 = pl.pallas_call(
            _make_select_matmul_kernel(w),
            out_shape=out_shape,
            grid_spec=pltpu.PrefetchScalarGridSpec(
                num_scalar_prefetch=0, grid=grid,
                in_specs=[x_spec, sel_spec], out_specs=out_spec),
            compiler_params=cparams,
            cost_estimate=cost,
        )(x2, sel)

    return out2.reshape(n, c, h, w_out)


@functools.lru_cache(maxsize=None)
def _best_impl(w_is_even, dtype_name):
    """One-time capability probe: first implementation that compiles AND is
    bit-exact on a tiny representative case wins."""
    if w_is_even:
        candidates = ("strided", "matmul")
        shape = (2, 4, 8, 32)
    else:
        candidates = ("matmul",)
        shape = (2, 4, 8, 9)
    size = 1
    for d in shape:
        size *= d
    base = (jnp.arange(size, dtype=jnp.float32) % 251.0) * 0.625 - 77.0
    probe = base.reshape(shape).astype(jnp.dtype(dtype_name))
    ref = probe[:, :, :, ::2]
    for impl in candidates:
        try:
            out = jax.block_until_ready(_slice_impl(probe, impl))
        except Exception:
            continue
        if out.shape == ref.shape and bool(jnp.array_equal(out, ref)):
            return impl
    return candidates[-1]


def slice_every_other_lastdim(x):
    """Pallas TPU equivalent of torch's x[:, :, :, ::2] for NCHW inputs."""
    if x.ndim != 4:
        raise ValueError(f"expected a 4-D NCHW input, got shape {x.shape}")
    impl = _best_impl(x.shape[-1] % 2 == 0, jnp.dtype(x.dtype).name)
    return _slice_impl(x, impl)


if __name__ == "__main__":
    key = jax.random.PRNGKey(0)
    x = jax.random.normal(key, (2, 4, 16, 16), dtype=jnp.float32)

    out = jax.block_until_ready(slice_every_other_lastdim(x))
    ref = x[:, :, :, ::2]
    assert out.shape == ref.shape, (out.shape, ref.shape)
    assert bool(jnp.array_equal(out, ref)), "mismatch vs reference strided slice"

    # Also exercise the odd-W (lane-dense MXU-deinterleave) path.
    x_odd = jax.random.normal(key, (2, 4, 8, 9), dtype=jnp.float32)
    out_odd = jax.block_until_ready(slice_every_other_lastdim(x_odd))
    ref_odd = x_odd[:, :, :, ::2]
    assert out_odd.shape == ref_odd.shape, (out_odd.shape, ref_odd.shape)
    assert bool(jnp.array_equal(out_odd, ref_odd)), "mismatch (odd W) vs reference"

    print("KERNEL_OK")
</pallas_src>

<mosaic_0001>
module attributes {stable_mosaic.version = 11 : i64} {
  func.func @_strided_copy_kernel(%arg0: i32, %arg1: i32, %arg2: memref<8x256xf32, #tpu.memory_space<vmem>>, %arg3: memref<8x128xf32, #tpu.memory_space<vmem>>) attributes {dimension_semantics = [#tpu.dimension_semantics<parallel>, #tpu.dimension_semantics<parallel>], iteration_bounds = array<i64: 1, 1>, scalar_prefetch = 0 : i64, scratch_operands = 0 : i64, tpu.core_type = #tpu.core_type<tc>, window_params = [{transform_indices = @transform_0, window_bounds = array<i64: 8, 256>}, {transform_indices = @transform_1, window_bounds = array<i64: 8, 128>}]} {
    %c0 = arith.constant 0 : index
    %c0_0 = arith.constant 0 : index
    %0 = tpu.strided_load %arg2[%c0, %c0_0] {strides = array<i32: 1, 2>} : memref<8x256xf32, #tpu.memory_space<vmem>>, vector<8x128xf32>
    %c0_1 = arith.constant 0 : index
    %c0_2 = arith.constant 0 : index
    %1 = vector.load %arg3[%c0_1, %c0_2] : memref<8x128xf32, #tpu.memory_space<vmem>>, vector<8x128xf32>
    tpu.vector_store %arg3[%c0_1, %c0_2], %0 {strides = array<i32>} : memref<8x128xf32, #tpu.memory_space<vmem>>, vector<8x128xf32>,
    return
  }
  func.func @transform_0(%arg0: i32, %arg1: i32) -> (i32, i32) {
    %c0_i32 = arith.constant 0 : i32
    return %arg0, %arg1 : i32, i32
  }
  func.func @transform_1(%arg0: i32, %arg1: i32) -> (i32, i32) {
    %c0_i32 = arith.constant 0 : i32
    return %arg0, %arg1 : i32, i32
  }
}

module attributes {stable_mosaic.version = 11 : i64} {
  func.func @kernel(%arg0: i32, %arg1: i32, %arg2: memref<8x256xf32, #tpu.memory_space<vmem>>, %arg3: memref<256x128xbf16, #tpu.memory_space<vmem>>, %arg4: memref<8x128xf32, #tpu.memory_space<vmem>>) attributes {dimension_semantics = [#tpu.dimension_semantics<parallel>, #tpu.dimension_semantics<parallel>], iteration_bounds = array<i64: 1, 1>, scalar_prefetch = 0 : i64, scratch_operands = 0 : i64, tpu.core_type = #tpu.core_type<tc>, window_params = [{transform_indices = @transform_0, window_bounds = array<i64: 8, 256>}, {pipeline_mode = #tpu.pipeline_mode<synchronous>, transform_indices = @transform_1, window_bounds = array<i64: 256, 128>}, {transform_indices = @transform_2, window_bounds = array<i64: 8, 128>}]} {
    %c0 = arith.constant 0 : index
    %c0_0 = arith.constant 0 : index
    %0 = vector.load %arg2[%c0, %c0_0] : memref<8x256xf32, #tpu.memory_space<vmem>>, vector<8x256xf32>
    %1 = tpu.iota {dimensions = array<i32: 1>} : vector<8x256xi32>
    %c32_i32 = arith.constant 32 : i32
    %c0_i32 = arith.constant 0 : i32
    %2 = arith.cmpi eq, %c32_i32, %c0_i32 : i32
    %c1_i32 = arith.constant 1 : i32
    %3 = arith.select %2, %c1_i32, %c32_i32 : i32
    %4 = vector.broadcast %3 : i32 to vector<8x256xi32>
    %5 = arith.remsi %1, %4 : vector<8x256xi32>
    %c0_i32_1 = arith.constant 0 : i32
    %6 = vector.broadcast %c0_i32_1 : i32 to vector<8x256xi32>
    %7 = arith.cmpi ne, %5, %6 : vector<8x256xi32>
    %c0_i32_2 = arith.constant 0 : i32
    %8 = vector.broadcast %c0_i32_2 : i32 to vector<8x256xi32>
    %9 = arith.cmpi slt, %5, %8 : vector<8x256xi32>
    %c0_i32_3 = arith.constant 0 : i32
    %10 = arith.cmpi slt, %3, %c0_i32_3 : i32
    %11 = vector.broadcast %10 : i1 to vector<8x256xi1>
    %12 = vector.broadcast %11 : vector<8x256xi1> to vector<8x256xi1>
    %13 = arith.xori %9, %12 : vector<8x256xi1>
    %14 = arith.andi %13, %7 : vector<8x256xi1>
    %15 = vector.broadcast %3 : i32 to vector<8x256xi32>
    %16 = arith.addi %5, %15 : vector<8x256xi32>
    %17 = arith.select %14, %16, %5 : vector<8x256xi1>, vector<8x256xi32>
    %c2_i32 = arith.constant 2 : i32
    %c0_i32_4 = arith.constant 0 : i32
    %18 = arith.cmpi eq, %c2_i32, %c0_i32_4 : i32
    %c1_i32_5 = arith.constant 1 : i32
    %19 = arith.select %18, %c1_i32_5, %c2_i32 : i32
    %20 = vector.broadcast %19 : i32 to vector<8x256xi32>
    %21 = arith.remsi %17, %20 : vector<8x256xi32>
    %c0_i32_6 = arith.constant 0 : i32
    %22 = vector.broadcast %c0_i32_6 : i32 to vector<8x256xi32>
    %23 = arith.cmpi ne, %21, %22 : vector<8x256xi32>
    %c0_i32_7 = arith.constant 0 : i32
    %24 = vector.broadcast %c0_i32_7 : i32 to vector<8x256xi32>
    %25 = arith.cmpi slt, %21, %24 : vector<8x256xi32>
    %c0_i32_8 = arith.constant 0 : i32
    %26 = arith.cmpi slt, %19, %c0_i32_8 : i32
    %27 = vector.broadcast %26 : i1 to vector<8x256xi1>
    %28 = vector.broadcast %27 : vector<8x256xi1> to vector<8x256xi1>
    %29 = arith.xori %25, %28 : vector<8x256xi1>
    %30 = arith.andi %29, %23 : vector<8x256xi1>
    %31 = vector.broadcast %19 : i32 to vector<8x256xi32>
    %32 = arith.addi %21, %31 : vector<8x256xi32>
    %33 = arith.select %30, %32, %21 : vector<8x256xi1>, vector<8x256xi32>
    %c0_i32_9 = arith.constant 0 : i32
    %34 = vector.broadcast %c0_i32_9 : i32 to vector<8x256xi32>
    %35 = arith.cmpi eq, %33, %34 : vector<8x256xi32>
    %cst = arith.constant 0.000000e+00 : f32
    %36 = vector.broadcast %cst : f32 to vector<8x256xf32>
    %37 = arith.select %35, %0, %36 : vector<8x256xi1>, vector<8x256xf32>
    %c0_10 = arith.constant 0 : index
    %c0_11 = arith.constant 0 : index
    %38 = vector.load %arg3[%c0_10, %c0_11] : memref<256x128xbf16, #tpu.memory_space<vmem>>, vector<256x128xbf16>
    %39 = arith.truncf %37 : vector<8x256xf32> to vector<8x256xbf16>
    %40 = arith.extf %39 : vector<8x256xbf16> to vector<8x256xf32>
    %41 = arith.subf %37, %40 : vector<8x256xf32>
    %42 = arith.truncf %41 : vector<8x256xf32> to vector<8x256xbf16>
    %43 = arith.extf %42 : vector<8x256xbf16> to vector<8x256xf32>
    %44 = arith.subf %41, %43 : vector<8x256xf32>
    %45 = arith.truncf %44 : vector<8x256xf32> to vector<8x256xbf16>
    %cst_12 = arith.constant dense<0.000000e+00> : vector<8x128xf32>
    %46 = tpu.matmul %39, %38, %cst_12 {dimension_numbers = #tpu.dot_dimension_numbers<[1], [0], [0], [1], [0, 0, 1, 1], [], []>} : vector<8x256xbf16>, vector<256x128xbf16>, vector<8x128xf32> -> vector<8x128xf32>
    %cst_13 = arith.constant dense<0.000000e+00> : vector<8x128xf32>
    %47 = tpu.matmul %42, %38, %cst_13 {dimension_numbers = #tpu.dot_dimension_numbers<[1], [0], [0], [1], [0, 0, 1, 1], [], []>} : vector<8x256xbf16>, vector<256x128xbf16>, vector<8x128xf32> -> vector<8x128xf32>
    %48 = arith.addf %46, %47 : vector<8x128xf32>
    %cst_14 = arith.constant dense<0.000000e+00> : vector<8x128xf32>
    %49 = tpu.matmul %45, %38, %cst_14 {dimension_numbers = #tpu.dot_dimension_numbers<[1], [0], [0], [1], [0, 0, 1, 1], [], []>} : vector<8x256xbf16>, vector<256x128xbf16>, vector<8x128xf32> -> vector<8x128xf32>
    %50 = arith.addf %48, %49 : vector<8x128xf32>
    %c0_15 = arith.constant 0 : index
    %c0_16 = arith.constant 0 : index
    %51 = vector.load %arg4[%c0_15, %c0_16] : memref<8x128xf32, #tpu.memory_space<vmem>>, vector<8x128xf32>
    tpu.vector_store %arg4[%c0_15, %c0_16], %50 {strides = array<i32>} : memref<8x128xf32, #tpu.memory_space<vmem>>, vector<8x128xf32>,
    return
  }
  func.func @transform_0(%arg0: i32, %arg1: i32) -> (i32, i32) {
    %c0_i32 = arith.constant 0 : i32
    return %arg0, %arg1 : i32, i32
  }
  func.func @transform_1(%arg0: i32, %arg1: i32) -> (i32, i32) {
    %c0_i32 = arith.constant 0 : i32
    %c0_i32_0 = arith.constant 0 : i32
    %c0_i32_1 = arith.constant 0 : i32
    return %c0_i32, %c0_i32_0 : i32, i32
  }
  func.func @transform_2(%arg0: i32, %arg1: i32) -> (i32, i32) {
    %c0_i32 = arith.constant 0 : i32
    return %arg0, %arg1 : i32, i32
  }
}

module attributes {stable_mosaic.version = 11 : i64} {
  func.func @kernel(%arg0: i32, %arg1: i32, %arg2: memref<8x256xf32, #tpu.memory_space<vmem>>, %arg3: memref<256x128xbf16, #tpu.memory_space<vmem>>, %arg4: memref<8x128xf32, #tpu.memory_space<vmem>>) attributes {dimension_semantics = [#tpu.dimension_semantics<parallel>, #tpu.dimension_semantics<parallel>], iteration_bounds = array<i64: 1, 1>, scalar_prefetch = 0 : i64, scratch_operands = 0 : i64, tpu.core_type = #tpu.core_type<tc>, window_params = [{transform_indices = @transform_0, window_bounds = array<i64: 8, 256>}, {pipeline_mode = #tpu.pipeline_mode<synchronous>, transform_indices = @transform_1, window_bounds = array<i64: 256, 128>}, {transform_indices = @transform_2, window_bounds = array<i64: 8, 128>}]} {
    %c0 = arith.constant 0 : index
    %c0_0 = arith.constant 0 : index
    %0 = vector.load %arg2[%c0, %c0_0] : memref<8x256xf32, #tpu.memory_space<vmem>>, vector<8x256xf32>
    %1 = tpu.iota {dimensions = array<i32: 1>} : vector<8x256xi32>
    %c16_i32 = arith.constant 16 : i32
    %c0_i32 = arith.constant 0 : i32
    %2 = arith.cmpi eq, %c16_i32, %c0_i32 : i32
    %c1_i32 = arith.constant 1 : i32
    %3 = arith.select %2, %c1_i32, %c16_i32 : i32
    %4 = vector.broadcast %3 : i32 to vector<8x256xi32>
    %5 = arith.remsi %1, %4 : vector<8x256xi32>
    %c0_i32_1 = arith.constant 0 : i32
    %6 = vector.broadcast %c0_i32_1 : i32 to vector<8x256xi32>
    %7 = arith.cmpi ne, %5, %6 : vector<8x256xi32>
    %c0_i32_2 = arith.constant 0 : i32
    %8 = vector.broadcast %c0_i32_2 : i32 to vector<8x256xi32>
    %9 = arith.cmpi slt, %5, %8 : vector<8x256xi32>
    %c0_i32_3 = arith.constant 0 : i32
    %10 = arith.cmpi slt, %3, %c0_i32_3 : i32
    %11 = vector.broadcast %10 : i1 to vector<8x256xi1>
    %12 = vector.broadcast %11 : vector<8x256xi1> to vector<8x256xi1>
    %13 = arith.xori %9, %12 : vector<8x256xi1>
    %14 = arith.andi %13, %7 : vector<8x256xi1>
    %15 = vector.broadcast %3 : i32 to vector<8x256xi32>
    %16 = arith.addi %5, %15 : vector<8x256xi32>
    %17 = arith.select %14, %16, %5 : vector<8x256xi1>, vector<8x256xi32>
    %c2_i32 = arith.constant 2 : i32
    %c0_i32_4 = arith.constant 0 : i32
    %18 = arith.cmpi eq, %c2_i32, %c0_i32_4 : i32
    %c1_i32_5 = arith.constant 1 : i32
    %19 = arith.select %18, %c1_i32_5, %c2_i32 : i32
    %20 = vector.broadcast %19 : i32 to vector<8x256xi32>
    %21 = arith.remsi %17, %20 : vector<8x256xi32>
    %c0_i32_6 = arith.constant 0 : i32
    %22 = vector.broadcast %c0_i32_6 : i32 to vector<8x256xi32>
    %23 = arith.cmpi ne, %21, %22 : vector<8x256xi32>
    %c0_i32_7 = arith.constant 0 : i32
    %24 = vector.broadcast %c0_i32_7 : i32 to vector<8x256xi32>
    %25 = arith.cmpi slt, %21, %24 : vector<8x256xi32>
    %c0_i32_8 = arith.constant 0 : i32
    %26 = arith.cmpi slt, %19, %c0_i32_8 : i32
    %27 = vector.broadcast %26 : i1 to vector<8x256xi1>
    %28 = vector.broadcast %27 : vector<8x256xi1> to vector<8x256xi1>
    %29 = arith.xori %25, %28 : vector<8x256xi1>
    %30 = arith.andi %29, %23 : vector<8x256xi1>
    %31 = vector.broadcast %19 : i32 to vector<8x256xi32>
    %32 = arith.addi %21, %31 : vector<8x256xi32>
    %33 = arith.select %30, %32, %21 : vector<8x256xi1>, vector<8x256xi32>
    %c0_i32_9 = arith.constant 0 : i32
    %34 = vector.broadcast %c0_i32_9 : i32 to vector<8x256xi32>
    %35 = arith.cmpi eq, %33, %34 : vector<8x256xi32>
    %cst = arith.constant 0.000000e+00 : f32
    %36 = vector.broadcast %cst : f32 to vector<8x256xf32>
    %37 = arith.select %35, %0, %36 : vector<8x256xi1>, vector<8x256xf32>
    %c0_10 = arith.constant 0 : index
    %c0_11 = arith.constant 0 : index
    %38 = vector.load %arg3[%c0_10, %c0_11] : memref<256x128xbf16, #tpu.memory_space<vmem>>, vector<256x128xbf16>
    %39 = arith.truncf %37 : vector<8x256xf32> to vector<8x256xbf16>
    %40 = arith.extf %39 : vector<8x256xbf16> to vector<8x256xf32>
    %41 = arith.subf %37, %40 : vector<8x256xf32>
    %42 = arith.truncf %41 : vector<8x256xf32> to vector<8x256xbf16>
    %43 = arith.extf %42 : vector<8x256xbf16> to vector<8x256xf32>
    %44 = arith.subf %41, %43 : vector<8x256xf32>
    %45 = arith.truncf %44 : vector<8x256xf32> to vector<8x256xbf16>
    %cst_12 = arith.constant dense<0.000000e+00> : vector<8x128xf32>
    %46 = tpu.matmul %39, %38, %cst_12 {dimension_numbers = #tpu.dot_dimension_numbers<[1], [0], [0], [1], [0, 0, 1, 1], [], []>} : vector<8x256xbf16>, vector<256x128xbf16>, vector<8x128xf32> -> vector<8x128xf32>
    %cst_13 = arith.constant dense<0.000000e+00> : vector<8x128xf32>
    %47 = tpu.matmul %42, %38, %cst_13 {dimension_numbers = #tpu.dot_dimension_numbers<[1], [0], [0], [1], [0, 0, 1, 1], [], []>} : vector<8x256xbf16>, vector<256x128xbf16>, vector<8x128xf32> -> vector<8x128xf32>
    %48 = arith.addf %46, %47 : vector<8x128xf32>
    %cst_14 = arith.constant dense<0.000000e+00> : vector<8x128xf32>
    %49 = tpu.matmul %45, %38, %cst_14 {dimension_numbers = #tpu.dot_dimension_numbers<[1], [0], [0], [1], [0, 0, 1, 1], [], []>} : vector<8x256xbf16>, vector<256x128xbf16>, vector<8x128xf32> -> vector<8x128xf32>
    %50 = arith.addf %48, %49 : vector<8x128xf32>
    %c0_15 = arith.constant 0 : index
    %c0_16 = arith.constant 0 : index
    %51 = vector.load %arg4[%c0_15, %c0_16] : memref<8x128xf32, #tpu.memory_space<vmem>>, vector<8x128xf32>
    tpu.vector_store %arg4[%c0_15, %c0_16], %50 {strides = array<i32>} : memref<8x128xf32, #tpu.memory_space<vmem>>, vector<8x128xf32>,
    return
  }
  func.func @transform_0(%arg0: i32, %arg1: i32) -> (i32, i32) {
    %c0_i32 = arith.constant 0 : i32
    return %arg0, %arg1 : i32, i32
  }
  func.func @transform_1(%arg0: i32, %arg1: i32) -> (i32, i32) {
    %c0_i32 = arith.constant 0 : i32
    %c0_i32_0 = arith.constant 0 : i32
    %c0_i32_1 = arith.constant 0 : i32
    return %c0_i32, %c0_i32_0 : i32, i32
  }
  func.func @transform_2(%arg0: i32, %arg1: i32) -> (i32, i32) {
    %c0_i32 = arith.constant 0 : i32
    return %arg0, %arg1 : i32, i32
  }
}

</mosaic_0001>

<llo_original>
// kernel: tpu_custom_call.1
$region0: #{tpu_custom_call.1}
  #allocation0 [shape = 'u32[]', space=smem, size = 0x4, offset = 0x4, fixed_abs, tag = 'smem constant byte address 0x4 - core index']
  #allocation1 [shape = 'u32[144,128]{1,0:T(1,128)}', space=vmem, size = 0x12000, scoped, tag = 'internal scratch']
  %s0 = inlined_call_operand.hbm [shape: f32[8,256], index: 0, kind: input, shape index: {}]
  %s1 = inlined_call_operand.hbm [shape: bf16[256,128], index: 1, kind: input, shape index: {}]
  %s2 = inlined_call_operand.hbm [shape: f32[8,128], index: 2, kind: output, shape index: {}]
  %s3 = sld [smem:[#allocation0]]
  $region26: #{tpu_custom_call.1} parent=0
    _
  %s5 = ssub.s32 1, %s3
  %s6 = scalar_select 0, %s5, %s3
  $region1: #{tpu_custom_call.1} parent=0
    #allocation2 [shape = 'u8[8192]{0}', space=vmem, size = 0x2000, scoped, tag = 'input window, operand 0, single buffered']
    #allocation3 [shape = 's32[1]{0}', space=sflag, size = 0x4, scoped, tag = 'scoped memory for tpu_custom_call.1']
    #allocation4 [shape = 's32[1]{0}', space=sflag, size = 0x4, scoped, tag = 'scoped memory for tpu_custom_call.1']
    #allocation5 [shape = 'u8[65536]{0}', space=vmem, size = 0x10000, scoped, tag = 'input window, operand 1, single buffered']
    #allocation6 [shape = 's32[1]{0}', space=sflag, size = 0x4, scoped, tag = 'scoped memory for tpu_custom_call.1']
    #allocation7 [shape = 'u8[4096]{0}', space=vmem, size = 0x1000, scoped, tag = 'output window, operand 0, single buffered']
    %7 = vsyncpa [#allocation3], 0
    %8 = vsyncpa [#allocation6], 0
    %9 = vsyncpa [#allocation4], 0
    // Predicated region
    $region2: #{tpu_custom_call.1} parent=1 // pred_check
      _
    $region3: #{tpu_custom_call.1} parent=1 // pred_check_branch
      %11 = sbr.rel (0) target = $region5
    $region4: #{tpu_custom_call.1} parent=1 // pred_region
      %s13 = ssub.s32 256, 256
      %14 = vsyncadd [#allocation3], %s13
      %s16 = sshll.u32 [#allocation2], 4
      %s17 = int_to_ptr.vmem [resolvable:$true] %s16
      %19 = dma.hbm_to_vmem [thread:$0]  %s0, 256, %s17, [#allocation3]
    $region5: #{tpu_custom_call.1} parent=1 // pred_fallthru
      _
    // Predicated region
    $region6: #{tpu_custom_call.1} parent=1 // pred_check
      _
    $region7: #{tpu_custom_call.1} parent=1 // pred_check_branch
      %21 = sbr.rel (0) target = $region9
    $region8: #{tpu_custom_call.1} parent=1 // pred_region
      %s23 = ssub.s32 2048, 2048
      %24 = vsyncadd [#allocation6], %s23
      %s25 = sshll.u32 [#allocation5], 4
      %s26 = int_to_ptr.vmem [resolvable:$true] %s25
      %31 = dma.hbm_to_vmem [thread:$0]  %s1, 2048, %s26, [#allocation6], 64, 64, 4
    $region9: #{tpu_custom_call.1} parent=1 // pred_fallthru
      _
    // Predicated region
    $region10: #{tpu_custom_call.1} parent=1 // pred_check
      _
    $region11: #{tpu_custom_call.1} parent=1 // pred_check_branch
      %33 = sbr.rel (0) target = $region13
    $region12: #{tpu_custom_call.1} parent=1 // pred_region
      %34 = dma.done [#allocation3], 256
    $region13: #{tpu_custom_call.1} parent=1 // pred_fallthru
      _
    // Predicated region
    $region14: #{tpu_custom_call.1} parent=1 // pred_check
      _
    $region15: #{tpu_custom_call.1} parent=1 // pred_check_branch
      %36 = sbr.rel (0) target = $region17
    $region16: #{tpu_custom_call.1} parent=1 // pred_region
      %37 = dma.done [#allocation6], 2048
    $region17: #{tpu_custom_call.1} parent=1 // pred_fallthru
      _
    %v39 = vld [vmem:[#allocation2] sm:$0xff]
    %v40 = vld [vmem:[#allocation2 + $0x8] sm:$0xff]
    %v41 = vlaneseq
    %v42 = vand.u32 %v41, 127
    %v43 = vadd.s32 %v42, 128
    %vm44 = vcmp.lt.s32.totalorder %v42, 0
    %v45 = vsub.s32 0, %v42
    %v46 = vsel %vm44, %v45, %v42
    %v47 = vshrl.u32 %v46, 5
    %v48 = vand.u32 %v46, 31
    %v49 = vsub.s32 0, %v48
    %v50 = vsel %vm44, %v49, %v48
    %vm51 = vcmp.lt.s32.totalorder %v43, 0
    %v52 = vsub.s32 0, %v43
    %v53 = vsel %vm51, %v52, %v43
    %v54 = vshrl.u32 %v53, 5
    %v55 = vand.u32 %v53, 31
    %v56 = vsub.s32 0, %v55
    %v57 = vsel %vm51, %v56, %v55
    %vm58 = vcmp.ne.s32.totalorder %v50, 0
    %vm59 = vcmp.ne.s32.totalorder %v57, 0
    %vm60 = vcmp.lt.s32.totalorder %v50, 0
    %vm61 = vcmp.lt.s32.totalorder %v57, 0
    %vm62 = vmand %vm60, %vm58
    %vm63 = vmand %vm61, %vm59
    %v64 = vadd.s32 %v50, 32
    %v65 = vadd.s32 %v57, 32
    %v66 = vsel %vm62, %v64, %v50
    %v67 = vsel %vm63, %v65, %v57
    %vm68 = vcmp.lt.s32.totalorder %v66, 0
    %v69 = vsub.s32 0, %v66
    %v70 = vsel %vm68, %v69, %v66
    %v71 = vshrl.u32 %v70, 1
    %v72 = vand.u32 %v70, 1
    %v73 = vsub.s32 0, %v72
    %v74 = vsel %vm68, %v73, %v72
    %vm75 = vcmp.lt.s32.totalorder %v67, 0
    %v76 = vsub.s32 0, %v67
    %v77 = vsel %vm75, %v76, %v67
    %v78 = vshrl.u32 %v77, 1
    %v79 = vand.u32 %v77, 1
    %v80 = vsub.s32 0, %v79
    %v81 = vsel %vm75, %v80, %v79
    %vm82 = vcmp.ne.s32.totalorder %v74, 0
    %vm83 = vcmp.ne.s32.totalorder %v81, 0
    %vm84 = vcmp.lt.s32.totalorder %v74, 0
    %vm85 = vcmp.lt.s32.totalorder %v81, 0
    %vm86 = vmand %vm84, %vm82
    %vm87 = vmand %vm85, %vm83
    %v88 = vadd.s32 %v74, 2
    %v89 = vadd.s32 %v81, 2
    %v90 = vsel %vm86, %v88, %v74
    %v91 = vsel %vm87, %v89, %v81
    %vm92 = vcmp.eq.s32.totalorder %v90, 0
    %vm93 = vcmp.eq.s32.totalorder %v91, 0
    %v94 = vsel %vm92, %v39, 0.0
    %v95 = vsel %vm93, %v40, 0.0
    %v96 = vld [vmem:[#allocation5] sm:$0xf]
    %v97 = vld [vmem:[#allocation5 + $0x4] sm:$0xf]
    %v98 = vld [vmem:[#allocation5 + $0x8] sm:$0xf]
    %v99 = vld [vmem:[#allocation5 + $0xc] sm:$0xf]
    %v100 = vld [vmem:[#allocation5 + $0x10] sm:$0xf]
    %v101 = vld [vmem:[#allocation5 + $0x14] sm:$0xf]
    %v102 = vld [vmem:[#allocation5 + $0x18] sm:$0xf]
    %v103 = vld [vmem:[#allocation5 + $0x1c] sm:$0xf]
    %v104 = vld [vmem:[#allocation5 + $0x20] sm:$0xf]
    %v105 = vld [vmem:[#allocation5 + $0x24] sm:$0xf]
    %v106 = vld [vmem:[#allocation5 + $0x28] sm:$0xf]
    %v107 = vld [vmem:[#allocation5 + $0x2c] sm:$0xf]
    %v108 = vld [vmem:[#allocation5 + $0x30] sm:$0xf]
    %v109 = vld [vmem:[#allocation5 + $0x34] sm:$0xf]
    %v110 = vld [vmem:[#allocation5 + $0x38] sm:$0xf]
    %v111 = vld [vmem:[#allocation5 + $0x3c] sm:$0xf]
    %v112 = vld [vmem:[#allocation5 + $0x40] sm:$0xf]
    %v113 = vld [vmem:[#allocation5 + $0x44] sm:$0xf]
    %v114 = vld [vmem:[#allocation5 + $0x48] sm:$0xf]
    %v115 = vld [vmem:[#allocation5 + $0x4c] sm:$0xf]
    %v116 = vld [vmem:[#allocation5 + $0x50] sm:$0xf]
    %v117 = vld [vmem:[#allocation5 + $0x54] sm:$0xf]
    %v118 = vld [vmem:[#allocation5 + $0x58] sm:$0xf]
    %v119 = vld [vmem:[#allocation5 + $0x5c] sm:$0xf]
    %v120 = vld [vmem:[#allocation5 + $0x60] sm:$0xf]
    %v121 = vld [vmem:[#allocation5 + $0x64] sm:$0xf]
    %v122 = vld [vmem:[#allocation5 + $0x68] sm:$0xf]
    %v123 = vld [vmem:[#allocation5 + $0x6c] sm:$0xf]
    %v124 = vld [vmem:[#allocation5 + $0x70] sm:$0xf]
    %v125 = vld [vmem:[#allocation5 + $0x74] sm:$0xf]
    %v126 = vld [vmem:[#allocation5 + $0x78] sm:$0xf]
    %v127 = vld [vmem:[#allocation5 + $0x7c] sm:$0xf]
    %v128 = vpack.c.bf16 %v94, %v94
    %v129 = vpack.c.bf16 %v95, %v95
    %v130 = vunpack.c.l.bf16 %v128
    %v131 = vunpack.c.l.bf16 %v129
    %v132 = vsub.f32 %v94, %v130
    %v133 = vsub.f32 %v95, %v131
    %v134 = vpack.c.bf16 %v132, %v132
    %v135 = vpack.c.bf16 %v133, %v133
    %v136 = vunpack.c.l.bf16 %v134
    %v137 = vunpack.c.l.bf16 %v135
    %v138 = vsub.f32 %v132, %v136
    %v139 = vsub.f32 %v133, %v137
    %v140 = vpack.c.bf16 %v138, %v138
    %v141 = vpack.c.bf16 %v139, %v139
    %v174 = vunpack.c.l.b16 %v96
    %v175 = vunpack.c.l.b16 %v97
    %v176 = vunpack.c.l.b16 %v98
    %v177 = vunpack.c.l.b16 %v99
    %v178 = vunpack.c.l.b16 %v100
    %v179 = vunpack.c.l.b16 %v101
    %v180 = vunpack.c.l.b16 %v102
    %v181 = vunpack.c.l.b16 %v103
    %v182 = vunpack.c.l.b16 %v104
    %v183 = vunpack.c.l.b16 %v105
    %v184 = vunpack.c.l.b16 %v106
    %v185 = vunpack.c.l.b16 %v107
    %v186 = vunpack.c.l.b16 %v108
    %v187 = vunpack.c.l.b16 %v109
    %v188 = vunpack.c.l.b16 %v110
    %v189 = vunpack.c.l.b16 %v111
    %v190 = vunpack.c.l.b16 %v112
    %v191 = vunpack.c.l.b16 %v113
    %v192 = vunpack.c.l.b16 %v114
    %v193 = vunpack.c.l.b16 %v115
    %v194 = vunpack.c.l.b16 %v116
    %v195 = vunpack.c.l.b16 %v117
    %v196 = vunpack.c.l.b16 %v118
    %v197 = vunpack.c.l.b16 %v119
    %v198 = vunpack.c.l.b16 %v120
    %v199 = vunpack.c.l.b16 %v121
    %v200 = vunpack.c.l.b16 %v122
    %v201 = vunpack.c.l.b16 %v123
    %v202 = vunpack.c.l.b16 %v124
    %v203 = vunpack.c.l.b16 %v125
    %v204 = vunpack.c.l.b16 %v126
    %v205 = vunpack.c.l.b16 %v127
    %v206 = vpack.c.b16 %v175, %v174
    %v207 = vpack.c.b16 %v177, %v176
    %v208 = vpack.c.b16 %v179, %v178
    %v209 = vpack.c.b16 %v181, %v180
    %v210 = vpack.c.b16 %v183, %v182
    %v211 = vpack.c.b16 %v185, %v184
    %v212 = vpack.c.b16 %v187, %v186
    %v213 = vpack.c.b16 %v189, %v188
    %v214 = vpack.c.b16 %v191, %v190
    %v215 = vpack.c.b16 %v193, %v192
    %v216 = vpack.c.b16 %v195, %v194
    %v217 = vpack.c.b16 %v197, %v196
    %v218 = vpack.c.b16 %v199, %v198
    %v219 = vpack.c.b16 %v201, %v200
    %v220 = vpack.c.b16 %v203, %v202
    %v221 = vpack.c.b16 %v205, %v204
    %238 = vmatprep.subr.bf16.mxu0 0
    %239 = vmatpush1.bf16.msra.mxu0 %v213
    %240 = vmatprep.subr.bf16.mxu0 0
    %241 = vmatpush1.bf16.msra.mxu0 %v212
    %242 = vmatprep.subr.bf16.mxu0 0
    %243 = vmatpush1.bf16.msra.mxu0 %v211
    %244 = vmatprep.subr.bf16.mxu0 0
    %245 = vmatpush1.bf16.msra.mxu0 %v210
    %246 = vmatprep.subr.bf16.mxu0 0
    %247 = vmatpush1.bf16.msra.mxu0 %v209
    %248 = vmatprep.subr.bf16.mxu0 0
    %249 = vmatpush1.bf16.msra.mxu0 %v208
    %250 = vmatprep.subr.bf16.mxu0 0
    %251 = vmatpush1.bf16.msra.mxu0 %v207
    %252 = vmatprep.subr.bf16.mxu0 0
    %253 = vmatpush1.bf16.msra.mxu0 %v206
    %254 = vmatprep.subr.bf16.mxu0 0
    %255 = vmatpush2.bf16.msra.mxu0 %v221
    %256 = vmatprep.subr.bf16.mxu0 0
    %257 = vmatpush2.bf16.msra.mxu0 %v220
    %258 = vmatprep.subr.bf16.mxu0 0
    %259 = vmatpush2.bf16.msra.mxu0 %v219
    %260 = vmatprep.subr.bf16.mxu0 0
    %261 = vmatpush2.bf16.msra.mxu0 %v218
    %262 = vmatprep.subr.bf16.mxu0 0
    %263 = vmatpush2.bf16.msra.mxu0 %v217
    %264 = vmatprep.subr.bf16.mxu0 0
    %265 = vmatpush2.bf16.msra.mxu0 %v216
    %266 = vmatprep.subr.bf16.mxu0 0
    %267 = vmatpush2.bf16.msra.mxu0 %v215
    %268 = vmatprep.subr.bf16.mxu0 0
    %269 = vmatpush2.bf16.msra.mxu0 %v214
    %270 = vmatprep.mubr.bf16.mxu0 %v135
    %271 = vmatmul.mubr.bf16.gmra.mxu0 %v134
    %v272 = vpop.f32.mrf.mxu0
    %v273 = vadd.f32 0.0, %v272
    %v274 = vpop.f32.mrf.mxu0
    %v275 = vpop.f32.mrf.mxu0
    %v276 = vpop.f32.mrf.mxu0
    %277 = vdwg.mxu0
    %278 = vmatprep.subr.bf16.mxu0 0
    %279 = vmatpush1.bf16.msra.mxu0 %v213
    %280 = vmatprep.subr.bf16.mxu0 0
    %281 = vmatpush1.bf16.msra.mxu0 %v212
    %282 = vmatprep.subr.bf16.mxu0 0
    %283 = vmatpush1.bf16.msra.mxu0 %v211
    %284 = vmatprep.subr.bf16.mxu0 0
    %285 = vmatpush1.bf16.msra.mxu0 %v210
    %286 = vmatprep.subr.bf16.mxu0 0
    %287 = vmatpush1.bf16.msra.mxu0 %v209
    %288 = vmatprep.subr.bf16.mxu0 0
    %289 = vmatpush1.bf16.msra.mxu0 %v208
    %290 = vmatprep.subr.bf16.mxu0 0
    %291 = vmatpush1.bf16.msra.mxu0 %v207
    %292 = vmatprep.subr.bf16.mxu0 0
    %293 = vmatpush1.bf16.msra.mxu0 %v206
    %294 = vmatprep.subr.bf16.mxu0 0
    %295 = vmatpush2.bf16.msra.mxu0 %v221
    %296 = vmatprep.subr.bf16.mxu0 0
    %297 = vmatpush2.bf16.msra.mxu0 %v220
    %298 = vmatprep.subr.bf16.mxu0 0
    %299 = vmatpush2.bf16.msra.mxu0 %v219
    %300 = vmatprep.subr.bf16.mxu0 0
    %301 = vmatpush2.bf16.msra.mxu0 %v218
    %302 = vmatprep.subr.bf16.mxu0 0
    %303 = vmatpush2.bf16.msra.mxu0 %v217
    %304 = vmatprep.subr.bf16.mxu0 0
    %305 = vmatpush2.bf16.msra.mxu0 %v216
    %306 = vmatprep.subr.bf16.mxu0 0
    %307 = vmatpush2.bf16.msra.mxu0 %v215
    %308 = vmatprep.subr.bf16.mxu0 0
    %309 = vmatpush2.bf16.msra.mxu0 %v214
    %310 = vmatprep.mubr.bf16.mxu0 %v129
    %311 = vmatmul.mubr.bf16.gmra.mxu0 %v128
    %v312 = vpop.f32.mrf.mxu0
    %v313 = vadd.f32 %v273, %v312
    %v314 = vpop.f32.mrf.mxu0
    %v315 = vpop.f32.mrf.mxu0
    %v316 = vpop.f32.mrf.mxu0
    %317 = vdwg.mxu0
    %318 = vmatprep.subr.bf16.mxu0 0
    %319 = vmatpush1.bf16.msra.mxu0 %v213
    %320 = vmatprep.subr.bf16.mxu0 0
    %321 = vmatpush1.bf16.msra.mxu0 %v212
    %322 = vmatprep.subr.bf16.mxu0 0
    %323 = vmatpush1.bf16.msra.mxu0 %v211
    %324 = vmatprep.subr.bf16.mxu0 0
    %325 = vmatpush1.bf16.msra.mxu0 %v210
    %326 = vmatprep.subr.bf16.mxu0 0
    %327 = vmatpush1.bf16.msra.mxu0 %v209
    %328 = vmatprep.subr.bf16.mxu0 0
    %329 = vmatpush1.bf16.msra.mxu0 %v208
    %330 = vmatprep.subr.bf16.mxu0 0
    %331 = vmatpush1.bf16.msra.mxu0 %v207
    %332 = vmatprep.subr.bf16.mxu0 0
    %333 = vmatpush1.bf16.msra.mxu0 %v206
    %334 = vmatprep.subr.bf16.mxu0 0
    %335 = vmatpush2.bf16.msra.mxu0 %v221
    %336 = vmatprep.subr.bf16.mxu0 0
    %337 = vmatpush2.bf16.msra.mxu0 %v220
    %338 = vmatprep.subr.bf16.mxu0 0
    %339 = vmatpush2.bf16.msra.mxu0 %v219
    %340 = vmatprep.subr.bf16.mxu0 0
    %341 = vmatpush2.bf16.msra.mxu0 %v218
    %342 = vmatprep.subr.bf16.mxu0 0
    %343 = vmatpush2.bf16.msra.mxu0 %v217
    %344 = vmatprep.subr.bf16.mxu0 0
    %345 = vmatpush2.bf16.msra.mxu0 %v216
    %346 = vmatprep.subr.bf16.mxu0 0
    %347 = vmatpush2.bf16.msra.mxu0 %v215
    %348 = vmatprep.subr.bf16.mxu0 0
    %349 = vmatpush2.bf16.msra.mxu0 %v214
    %350 = vmatprep.mubr.bf16.mxu0 %v141
    %351 = vmatmul.mubr.bf16.gmra.mxu0 %v140
    %v352 = vpop.f32.mrf.mxu0
    %v353 = vadd.f32 0.0, %v352
    %v354 = vpop.f32.mrf.mxu0
    %v355 = vpop.f32.mrf.mxu0
    %v356 = vpop.f32.mrf.mxu0
    %357 = vdwg.mxu0
    %v358 = vadd.f32 %v313, %v353
    %359 = vst [vmem:[#allocation7] sm:$0xff] %v358
    // Predicated region
    $region18: #{tpu_custom_call.1} parent=1 // pred_check
      _
    $region19: #{tpu_custom_call.1} parent=1 // pred_check_branch
      %361 = sbr.rel (0) target = $region21
    $region20: #{tpu_custom_call.1} parent=1 // pred_region
      %s363 = ssub.s32 128, 128
      %364 = vsyncadd [#allocation4], %s363
      %s366 = sshll.u32 [#allocation7], 4
      %s367 = int_to_ptr.vmem [resolvable:$true] %s366
      %369 = dma.vmem_to_hbm [thread:$0]  %s367, 128, %s2, [#allocation4]
    $region21: #{tpu_custom_call.1} parent=1 // pred_fallthru
      _
    // Predicated region
    $region22: #{tpu_custom_call.1} parent=1 // pred_check
      _
    $region23: #{tpu_custom_call.1} parent=1 // pred_check_branch
      %371 = sbr.rel (0) target = $region25
    $region24: #{tpu_custom_call.1} parent=1 // pred_region
      %372 = dma.done [#allocation4], 128
    $region25: #{tpu_custom_call.1} parent=1 // pred_fallthru
      _
    %373 = vsyncpa [#allocation3], 1
    %374 = vsyncpa [#allocation6], 1
    %375 = vsyncpa [#allocation4], 1

// kernel: tpu_custom_call.1
$region0: #{tpu_custom_call.1}
  #allocation0 [shape = 'u32[]', space=smem, size = 0x4, offset = 0x4, fixed_abs, tag = 'smem constant byte address 0x4 - core index']
  #allocation1 [shape = 'u32[144,128]{1,0:T(1,128)}', space=vmem, size = 0x12000, scoped, tag = 'internal scratch']
  %s0 = inlined_call_operand.hbm [shape: f32[8,256], index: 0, kind: input, shape index: {}]
  %s1 = inlined_call_operand.hbm [shape: bf16[256,128], index: 1, kind: input, shape index: {}]
  %s2 = inlined_call_operand.hbm [shape: f32[8,128], index: 2, kind: output, shape index: {}]
  %s3 = sld [smem:[#allocation0]]
  $region26: #{tpu_custom_call.1} parent=0
    _
  %s5 = ssub.s32 1, %s3
  %s6 = scalar_select 0, %s5, %s3
  $region1: #{tpu_custom_call.1} parent=0
    #allocation2 [shape = 'u8[8192]{0}', space=vmem, size = 0x2000, scoped, tag = 'input window, operand 0, single buffered']
    #allocation3 [shape = 's32[1]{0}', space=sflag, size = 0x4, scoped, tag = 'scoped memory for tpu_custom_call.1']
    #allocation4 [shape = 's32[1]{0}', space=sflag, size = 0x4, scoped, tag = 'scoped memory for tpu_custom_call.1']
    #allocation5 [shape = 'u8[65536]{0}', space=vmem, size = 0x10000, scoped, tag = 'input window, operand 1, single buffered']
    #allocation6 [shape = 's32[1]{0}', space=sflag, size = 0x4, scoped, tag = 'scoped memory for tpu_custom_call.1']
    #allocation7 [shape = 'u8[4096]{0}', space=vmem, size = 0x1000, scoped, tag = 'output window, operand 0, single buffered']
    %7 = vsyncpa [#allocation3], 0
    %8 = vsyncpa [#allocation6], 0
    %9 = vsyncpa [#allocation4], 0
    // Predicated region
    $region2: #{tpu_custom_call.1} parent=1 // pred_check
      _
    $region3: #{tpu_custom_call.1} parent=1 // pred_check_branch
      %11 = sbr.rel (0) target = $region5
    $region4: #{tpu_custom_call.1} parent=1 // pred_region
      %s13 = ssub.s32 256, 256
      %14 = vsyncadd [#allocation3], %s13
      %s16 = sshll.u32 [#allocation2], 4
      %s17 = int_to_ptr.vmem [resolvable:$true] %s16
      %19 = dma.hbm_to_vmem [thread:$0]  %s0, 256, %s17, [#allocation3]
    $region5: #{tpu_custom_call.1} parent=1 // pred_fallthru
      _
    // Predicated region
    $region6: #{tpu_custom_call.1} parent=1 // pred_check
      _
    $region7: #{tpu_custom_call.1} parent=1 // pred_check_branch
      %21 = sbr.rel (0) target = $region9
    $region8: #{tpu_custom_call.1} parent=1 // pred_region
      %s23 = ssub.s32 2048, 2048
      %24 = vsyncadd [#allocation6], %s23
      %s25 = sshll.u32 [#allocation5], 4
      %s26 = int_to_ptr.vmem [resolvable:$true] %s25
      %31 = dma.hbm_to_vmem [thread:$0]  %s1, 2048, %s26, [#allocation6], 64, 64, 4
    $region9: #{tpu_custom_call.1} parent=1 // pred_fallthru
      _
    // Predicated region
    $region10: #{tpu_custom_call.1} parent=1 // pred_check
      _
    $region11: #{tpu_custom_call.1} parent=1 // pred_check_branch
      %33 = sbr.rel (0) target = $region13
    $region12: #{tpu_custom_call.1} parent=1 // pred_region
      %34 = dma.done [#allocation3], 256
    $region13: #{tpu_custom_call.1} parent=1 // pred_fallthru
      _
    // Predicated region
    $region14: #{tpu_custom_call.1} parent=1 // pred_check
      _
    $region15: #{tpu_custom_call.1} parent=1 // pred_check_branch
      %36 = sbr.rel (0) target = $region17
    $region16: #{tpu_custom_call.1} parent=1 // pred_region
      %37 = dma.done [#allocation6], 2048
    $region17: #{tpu_custom_call.1} parent=1 // pred_fallthru
      _
    %v39 = vld [vmem:[#allocation2] sm:$0xff]
    %v40 = vld [vmem:[#allocation2 + $0x8] sm:$0xff]
    %v41 = vlaneseq
    %v42 = vand.u32 %v41, 127
    %v43 = vadd.s32 %v42, 128
    %vm44 = vcmp.lt.s32.totalorder %v42, 0
    %v45 = vsub.s32 0, %v42
    %v46 = vsel %vm44, %v45, %v42
    %v47 = vshrl.u32 %v46, 4
    %v48 = vand.u32 %v46, 15
    %v49 = vsub.s32 0, %v48
    %v50 = vsel %vm44, %v49, %v48
    %vm51 = vcmp.lt.s32.totalorder %v43, 0
    %v52 = vsub.s32 0, %v43
    %v53 = vsel %vm51, %v52, %v43
    %v54 = vshrl.u32 %v53, 4
    %v55 = vand.u32 %v53, 15
    %v56 = vsub.s32 0, %v55
    %v57 = vsel %vm51, %v56, %v55
    %vm58 = vcmp.ne.s32.totalorder %v50, 0
    %vm59 = vcmp.ne.s32.totalorder %v57, 0
    %vm60 = vcmp.lt.s32.totalorder %v50, 0
    %vm61 = vcmp.lt.s32.totalorder %v57, 0
    %vm62 = vmand %vm60, %vm58
    %vm63 = vmand %vm61, %vm59
    %v64 = vadd.s32 %v50, 16
    %v65 = vadd.s32 %v57, 16
    %v66 = vsel %vm62, %v64, %v50
    %v67 = vsel %vm63, %v65, %v57
    %vm68 = vcmp.lt.s32.totalorder %v66, 0
    %v69 = vsub.s32 0, %v66
    %v70 = vsel %vm68, %v69, %v66
    %v71 = vshrl.u32 %v70, 1
    %v72 = vand.u32 %v70, 1
    %v73 = vsub.s32 0, %v72
    %v74 = vsel %vm68, %v73, %v72
    %vm75 = vcmp.lt.s32.totalorder %v67, 0
    %v76 = vsub.s32 0, %v67
    %v77 = vsel %vm75, %v76, %v67
    %v78 = vshrl.u32 %v77, 1
    %v79 = vand.u32 %v77, 1
    %v80 = vsub.s32 0, %v79
    %v81 = vsel %vm75, %v80, %v79
    %vm82 = vcmp.ne.s32.totalorder %v74, 0
    %vm83 = vcmp.ne.s32.totalorder %v81, 0
    %vm84 = vcmp.lt.s32.totalorder %v74, 0
    %vm85 = vcmp.lt.s32.totalorder %v81, 0
    %vm86 = vmand %vm84, %vm82
    %vm87 = vmand %vm85, %vm83
    %v88 = vadd.s32 %v74, 2
    %v89 = vadd.s32 %v81, 2
    %v90 = vsel %vm86, %v88, %v74
    %v91 = vsel %vm87, %v89, %v81
    %vm92 = vcmp.eq.s32.totalorder %v90, 0
    %vm93 = vcmp.eq.s32.totalorder %v91, 0
    %v94 = vsel %vm92, %v39, 0.0
    %v95 = vsel %vm93, %v40, 0.0
    %v96 = vld [vmem:[#allocation5] sm:$0xf]
    %v97 = vld [vmem:[#allocation5 + $0x4] sm:$0xf]
    %v98 = vld [vmem:[#allocation5 + $0x8] sm:$0xf]
    %v99 = vld [vmem:[#allocation5 + $0xc] sm:$0xf]
    %v100 = vld [vmem:[#allocation5 + $0x10] sm:$0xf]
    %v101 = vld [vmem:[#allocation5 + $0x14] sm:$0xf]
    %v102 = vld [vmem:[#allocation5 + $0x18] sm:$0xf]
    %v103 = vld [vmem:[#allocation5 + $0x1c] sm:$0xf]
    %v104 = vld [vmem:[#allocation5 + $0x20] sm:$0xf]
    %v105 = vld [vmem:[#allocation5 + $0x24] sm:$0xf]
    %v106 = vld [vmem:[#allocation5 + $0x28] sm:$0xf]
    %v107 = vld [vmem:[#allocation5 + $0x2c] sm:$0xf]
    %v108 = vld [vmem:[#allocation5 + $0x30] sm:$0xf]
    %v109 = vld [vmem:[#allocation5 + $0x34] sm:$0xf]
    %v110 = vld [vmem:[#allocation5 + $0x38] sm:$0xf]
    %v111 = vld [vmem:[#allocation5 + $0x3c] sm:$0xf]
    %v112 = vld [vmem:[#allocation5 + $0x40] sm:$0xf]
    %v113 = vld [vmem:[#allocation5 + $0x44] sm:$0xf]
    %v114 = vld [vmem:[#allocation5 + $0x48] sm:$0xf]
    %v115 = vld [vmem:[#allocation5 + $0x4c] sm:$0xf]
    %v116 = vld [vmem:[#allocation5 + $0x50] sm:$0xf]
    %v117 = vld [vmem:[#allocation5 + $0x54] sm:$0xf]
    %v118 = vld [vmem:[#allocation5 + $0x58] sm:$0xf]
    %v119 = vld [vmem:[#allocation5 + $0x5c] sm:$0xf]
    %v120 = vld [vmem:[#allocation5 + $0x60] sm:$0xf]
    %v121 = vld [vmem:[#allocation5 + $0x64] sm:$0xf]
    %v122 = vld [vmem:[#allocation5 + $0x68] sm:$0xf]
    %v123 = vld [vmem:[#allocation5 + $0x6c] sm:$0xf]
    %v124 = vld [vmem:[#allocation5 + $0x70] sm:$0xf]
    %v125 = vld [vmem:[#allocation5 + $0x74] sm:$0xf]
    %v126 = vld [vmem:[#allocation5 + $0x78] sm:$0xf]
    %v127 = vld [vmem:[#allocation5 + $0x7c] sm:$0xf]
    %v128 = vpack.c.bf16 %v94, %v94
    %v129 = vpack.c.bf16 %v95, %v95
    %v130 = vunpack.c.l.bf16 %v128
    %v131 = vunpack.c.l.bf16 %v129
    %v132 = vsub.f32 %v94, %v130
    %v133 = vsub.f32 %v95, %v131
    %v134 = vpack.c.bf16 %v132, %v132
    %v135 = vpack.c.bf16 %v133, %v133
    %v136 = vunpack.c.l.bf16 %v134
    %v137 = vunpack.c.l.bf16 %v135
    %v138 = vsub.f32 %v132, %v136
    %v139 = vsub.f32 %v133, %v137
    %v140 = vpack.c.bf16 %v138, %v138
    %v141 = vpack.c.bf16 %v139, %v139
    %v174 = vunpack.c.l.b16 %v96
    %v175 = vunpack.c.l.b16 %v97
    %v176 = vunpack.c.l.b16 %v98
    %v177 = vunpack.c.l.b16 %v99
    %v178 = vunpack.c.l.b16 %v100
    %v179 = vunpack.c.l.b16 %v101
    %v180 = vunpack.c.l.b16 %v102
    %v181 = vunpack.c.l.b16 %v103
    %v182 = vunpack.c.l.b16 %v104
    %v183 = vunpack.c.l.b16 %v105
    %v184 = vunpack.c.l.b16 %v106
    %v185 = vunpack.c.l.b16 %v107
    %v186 = vunpack.c.l.b16 %v108
    %v187 = vunpack.c.l.b16 %v109
    %v188 = vunpack.c.l.b16 %v110
    %v189 = vunpack.c.l.b16 %v111
    %v190 = vunpack.c.l.b16 %v112
    %v191 = vunpack.c.l.b16 %v113
    %v192 = vunpack.c.l.b16 %v114
    %v193 = vunpack.c.l.b16 %v115
    %v194 = vunpack.c.l.b16 %v116
    %v195 = vunpack.c.l.b16 %v117
    %v196 = vunpack.c.l.b16 %v118
    %v197 = vunpack.c.l.b16 %v119
    %v198 = vunpack.c.l.b16 %v120
    %v199 = vunpack.c.l.b16 %v121
    %v200 = vunpack.c.l.b16 %v122
    %v201 = vunpack.c.l.b16 %v123
    %v202 = vunpack.c.l.b16 %v124
    %v203 = vunpack.c.l.b16 %v125
    %v204 = vunpack.c.l.b16 %v126
    %v205 = vunpack.c.l.b16 %v127
    %v206 = vpack.c.b16 %v175, %v174
    %v207 = vpack.c.b16 %v177, %v176
    %v208 = vpack.c.b16 %v179, %v178
    %v209 = vpack.c.b16 %v181, %v180
    %v210 = vpack.c.b16 %v183, %v182
    %v211 = vpack.c.b16 %v185, %v184
    %v212 = vpack.c.b16 %v187, %v186
    %v213 = vpack.c.b16 %v189, %v188
    %v214 = vpack.c.b16 %v191, %v190
    %v215 = vpack.c.b16 %v193, %v192
    %v216 = vpack.c.b16 %v195, %v194
    %v217 = vpack.c.b16 %v197, %v196
    %v218 = vpack.c.b16 %v199, %v198
    %v219 = vpack.c.b16 %v201, %v200
    %v220 = vpack.c.b16 %v203, %v202
    %v221 = vpack.c.b16 %v205, %v204
    %238 = vmatprep.subr.bf16.mxu0 0
    %239 = vmatpush1.bf16.msra.mxu0 %v213
    %240 = vmatprep.subr.bf16.mxu0 0
    %241 = vmatpush1.bf16.msra.mxu0 %v212
    %242 = vmatprep.subr.bf16.mxu0 0
    %243 = vmatpush1.bf16.msra.mxu0 %v211
    %244 = vmatprep.subr.bf16.mxu0 0
    %245 = vmatpush1.bf16.msra.mxu0 %v210
    %246 = vmatprep.subr.bf16.mxu0 0
    %247 = vmatpush1.bf16.msra.mxu0 %v209
    %248 = vmatprep.subr.bf16.mxu0 0
    %249 = vmatpush1.bf16.msra.mxu0 %v208
    %250 = vmatprep.subr.bf16.mxu0 0
    %251 = vmatpush1.bf16.msra.mxu0 %v207
    %252 = vmatprep.subr.bf16.mxu0 0
    %253 = vmatpush1.bf16.msra.mxu0 %v206
    %254 = vmatprep.subr.bf16.mxu0 0
    %255 = vmatpush2.bf16.msra.mxu0 %v221
    %256 = vmatprep.subr.bf16.mxu0 0
    %257 = vmatpush2.bf16.msra.mxu0 %v220
    %258 = vmatprep.subr.bf16.mxu0 0
    %259 = vmatpush2.bf16.msra.mxu0 %v219
    %260 = vmatprep.subr.bf16.mxu0 0
    %261 = vmatpush2.bf16.msra.mxu0 %v218
    %262 = vmatprep.subr.bf16.mxu0 0
    %263 = vmatpush2.bf16.msra.mxu0 %v217
    %264 = vmatprep.subr.bf16.mxu0 0
    %265 = vmatpush2.bf16.msra.mxu0 %v216
    %266 = vmatprep.subr.bf16.mxu0 0
    %267 = vmatpush2.bf16.msra.mxu0 %v215
    %268 = vmatprep.subr.bf16.mxu0 0
    %269 = vmatpush2.bf16.msra.mxu0 %v214
    %270 = vmatprep.mubr.bf16.mxu0 %v135
    %271 = vmatmul.mubr.bf16.gmra.mxu0 %v134
    %v272 = vpop.f32.mrf.mxu0
    %v273 = vadd.f32 0.0, %v272
    %v274 = vpop.f32.mrf.mxu0
    %v275 = vpop.f32.mrf.mxu0
    %v276 = vpop.f32.mrf.mxu0
    %277 = vdwg.mxu0
    %278 = vmatprep.subr.bf16.mxu0 0
    %279 = vmatpush1.bf16.msra.mxu0 %v213
    %280 = vmatprep.subr.bf16.mxu0 0
    %281 = vmatpush1.bf16.msra.mxu0 %v212
    %282 = vmatprep.subr.bf16.mxu0 0
    %283 = vmatpush1.bf16.msra.mxu0 %v211
    %284 = vmatprep.subr.bf16.mxu0 0
    %285 = vmatpush1.bf16.msra.mxu0 %v210
    %286 = vmatprep.subr.bf16.mxu0 0
    %287 = vmatpush1.bf16.msra.mxu0 %v209
    %288 = vmatprep.subr.bf16.mxu0 0
    %289 = vmatpush1.bf16.msra.mxu0 %v208
    %290 = vmatprep.subr.bf16.mxu0 0
    %291 = vmatpush1.bf16.msra.mxu0 %v207
    %292 = vmatprep.subr.bf16.mxu0 0
    %293 = vmatpush1.bf16.msra.mxu0 %v206
    %294 = vmatprep.subr.bf16.mxu0 0
    %295 = vmatpush2.bf16.msra.mxu0 %v221
    %296 = vmatprep.subr.bf16.mxu0 0
    %297 = vmatpush2.bf16.msra.mxu0 %v220
    %298 = vmatprep.subr.bf16.mxu0 0
    %299 = vmatpush2.bf16.msra.mxu0 %v219
    %300 = vmatprep.subr.bf16.mxu0 0
    %301 = vmatpush2.bf16.msra.mxu0 %v218
    %302 = vmatprep.subr.bf16.mxu0 0
    %303 = vmatpush2.bf16.msra.mxu0 %v217
    %304 = vmatprep.subr.bf16.mxu0 0
    %305 = vmatpush2.bf16.msra.mxu0 %v216
    %306 = vmatprep.subr.bf16.mxu0 0
    %307 = vmatpush2.bf16.msra.mxu0 %v215
    %308 = vmatprep.subr.bf16.mxu0 0
    %309 = vmatpush2.bf16.msra.mxu0 %v214
    %310 = vmatprep.mubr.bf16.mxu0 %v129
    %311 = vmatmul.mubr.bf16.gmra.mxu0 %v128
    %v312 = vpop.f32.mrf.mxu0
    %v313 = vadd.f32 %v273, %v312
    %v314 = vpop.f32.mrf.mxu0
    %v315 = vpop.f32.mrf.mxu0
    %v316 = vpop.f32.mrf.mxu0
    %317 = vdwg.mxu0
    %318 = vmatprep.subr.bf16.mxu0 0
    %319 = vmatpush1.bf16.msra.mxu0 %v213
    %320 = vmatprep.subr.bf16.mxu0 0
    %321 = vmatpush1.bf16.msra.mxu0 %v212
    %322 = vmatprep.subr.bf16.mxu0 0
    %323 = vmatpush1.bf16.msra.mxu0 %v211
    %324 = vmatprep.subr.bf16.mxu0 0
    %325 = vmatpush1.bf16.msra.mxu0 %v210
    %326 = vmatprep.subr.bf16.mxu0 0
    %327 = vmatpush1.bf16.msra.mxu0 %v209
    %328 = vmatprep.subr.bf16.mxu0 0
    %329 = vmatpush1.bf16.msra.mxu0 %v208
    %330 = vmatprep.subr.bf16.mxu0 0
    %331 = vmatpush1.bf16.msra.mxu0 %v207
    %332 = vmatprep.subr.bf16.mxu0 0
    %333 = vmatpush1.bf16.msra.mxu0 %v206
    %334 = vmatprep.subr.bf16.mxu0 0
    %335 = vmatpush2.bf16.msra.mxu0 %v221
    %336 = vmatprep.subr.bf16.mxu0 0
    %337 = vmatpush2.bf16.msra.mxu0 %v220
    %338 = vmatprep.subr.bf16.mxu0 0
    %339 = vmatpush2.bf16.msra.mxu0 %v219
    %340 = vmatprep.subr.bf16.mxu0 0
    %341 = vmatpush2.bf16.msra.mxu0 %v218
    %342 = vmatprep.subr.bf16.mxu0 0
    %343 = vmatpush2.bf16.msra.mxu0 %v217
    %344 = vmatprep.subr.bf16.mxu0 0
    %345 = vmatpush2.bf16.msra.mxu0 %v216
    %346 = vmatprep.subr.bf16.mxu0 0
    %347 = vmatpush2.bf16.msra.mxu0 %v215
    %348 = vmatprep.subr.bf16.mxu0 0
    %349 = vmatpush2.bf16.msra.mxu0 %v214
    %350 = vmatprep.mubr.bf16.mxu0 %v141
    %351 = vmatmul.mubr.bf16.gmra.mxu0 %v140
    %v352 = vpop.f32.mrf.mxu0
    %v353 = vadd.f32 0.0, %v352
    %v354 = vpop.f32.mrf.mxu0
    %v355 = vpop.f32.mrf.mxu0
    %v356 = vpop.f32.mrf.mxu0
    %357 = vdwg.mxu0
    %v358 = vadd.f32 %v313, %v353
    %359 = vst [vmem:[#allocation7] sm:$0xff] %v358
    // Predicated region
    $region18: #{tpu_custom_call.1} parent=1 // pred_check
      _
    $region19: #{tpu_custom_call.1} parent=1 // pred_check_branch
      %361 = sbr.rel (0) target = $region21
    $region20: #{tpu_custom_call.1} parent=1 // pred_region
      %s363 = ssub.s32 128, 128
      %364 = vsyncadd [#allocation4], %s363
      %s366 = sshll.u32 [#allocation7], 4
      %s367 = int_to_ptr.vmem [resolvable:$true] %s366
      %369 = dma.vmem_to_hbm [thread:$0]  %s367, 128, %s2, [#allocation4]
    $region21: #{tpu_custom_call.1} parent=1 // pred_fallthru
      _
    // Predicated region
    $region22: #{tpu_custom_call.1} parent=1 // pred_check
      _
    $region23: #{tpu_custom_call.1} parent=1 // pred_check_branch
      %371 = sbr.rel (0) target = $region25
    $region24: #{tpu_custom_call.1} parent=1 // pred_region
      %372 = dma.done [#allocation4], 128
    $region25: #{tpu_custom_call.1} parent=1 // pred_fallthru
      _
    %373 = vsyncpa [#allocation3], 1
    %374 = vsyncpa [#allocation6], 1
    %375 = vsyncpa [#allocation4], 1

</llo_original>
